<compile_context>
chip_gen: v5e
topology: v5e:2x2
jax: 0.10.0
libtpu: 0.0.40
codegen_flags: <defaults>
</compile_context>

<pallas_src>
import jax
import jax.numpy as jnp
from jax import lax
from jax.experimental import pallas as pl
from jax.experimental.pallas import tpu as pltpu

_LANE = 128


def _vmem_capacity_bytes():
    """Physical VMEM per core; conservative fallback (v7x) if query fails."""
    try:
        info = pltpu.get_tpu_info()
        cap = getattr(info, "vmem_capacity_bytes", None)
        if cap:
            return int(cap)
    except Exception:
        pass
    return 64 << 20


# ---------------------------------------------------------------------------
# Discriminator kernel (Pallas)
# ---------------------------------------------------------------------------
def _disc_scores_kernel(u_ref, h_pl_ref, h_mi_ref, bias_ref, out_ref):
    """One (node-tile j, batch b) grid step.

    u_ref:    (B, n_h)    whole array, VMEM-resident; u[b] = W @ c[b] (wrapper)
    h_pl_ref: (TN, n_h)   positive node embeddings (batch dim squeezed)
    h_mi_ref: (TN, n_h)   corrupted node embeddings
    bias_ref: (1,)  f32   bilinear bias (SMEM)
    out_ref:  (2, TN) f32 row 0 = sc_1 tile, row 1 = sc_2 tile
    """
    b = pl.program_id(1)
    u = u_ref[pl.ds(b, 1), :]                       # (1, n_h), same dtype as h
    bias = bias_ref[0]
    dn = (((1,), (1,)), ((), ()))                   # contract hidden dims
    # sc[0, n] = sum_i u[0, i] * h[n, i]  -> (1, TN); bf16/f32 fed to MXU
    # directly, f32 accumulation via preferred_element_type.
    sc1 = lax.dot_general(u, h_pl_ref[...], dn, preferred_element_type=jnp.float32)
    sc2 = lax.dot_general(u, h_mi_ref[...], dn, preferred_element_type=jnp.float32)
    # Two single-sublane stores per step; negligible next to the multi-MiB DMAs.
    out_ref[0:1, :] = (sc1 + bias).astype(out_ref.dtype)
    out_ref[1:2, :] = (sc2 + bias).astype(out_ref.dtype)


def discriminator_forward(c, h_pl, h_mi, weight, bias,
                          s_bias1=None, s_bias2=None, *, block_nodes=None):
    """Pallas equivalent of Discriminator.forward -> logits of shape (B, 2N).

    c: (B, n_h); h_pl/h_mi: (B, N, n_h); weight: (1, n_h, n_h); bias: (1,)
    """
    B, N, n_h = h_pl.shape
    assert c.shape == (B, n_h) and h_mi.shape == (B, N, n_h)

    w2d = weight.reshape(n_h, n_h).astype(jnp.float32)
    bias1 = jnp.asarray(bias, jnp.float32).reshape(1)

    # (1) Hoist the summary transform out of the kernel: u[b] = W @ c[b].
    #     Cast to the streamed dtype so the MXU consumes the h tiles natively
    #     (accumulation stays f32 inside the kernel).
    u = jnp.dot(c.astype(jnp.float32), w2d.T).astype(h_pl.dtype)   # (B, n_h)

    itemsize = int(jnp.dtype(h_pl.dtype).itemsize)

    # (2) Node-tile size from the per-generation VMEM budget.  2 inputs x 2
    #     pipeline buffers x tile must fit; tn is a multiple of 128 (lane-dense
    #     output stores) and capped at 8192 to amortize per-step overhead.
    #     Neither N nor n_h is padded: the ragged final node block is masked by
    #     Pallas, and the hidden block dim equals the full array dim.
    vmem_cap = _vmem_capacity_bytes()
    vmem_limit = min(vmem_cap * 3 // 4, 96 << 20)        # 48 MiB v7x, 96 MiB v5e/v6e
    buf_budget = max(vmem_limit - (8 << 20), 16 << 20)
    if block_nodes is None:
        tn = buf_budget // (2 * 2 * n_h * itemsize)
        tn = min(max(_LANE, (tn // _LANE) * _LANE), 8192)
    else:
        tn = block_nodes
    tn = N if N <= tn else tn          # single full-extent block when N is small
    grid_j = pl.cdiv(N, tn)

    grid_spec = pltpu.PrefetchScalarGridSpec(
        num_scalar_prefetch=0,
        # Node-tile axis leads so megacore sharding splits the big axis even
        # when B is 1 or odd.
        grid=(grid_j, B),
        in_specs=[
            pl.BlockSpec(memory_space=pltpu.MemorySpace.VMEM),                  # u (whole)
            pl.BlockSpec((pl.Squeezed(), tn, n_h), lambda j, b: (b, j, 0)),     # h_pl
            pl.BlockSpec((pl.Squeezed(), tn, n_h), lambda j, b: (b, j, 0)),     # h_mi
            pl.BlockSpec(memory_space=pltpu.MemorySpace.SMEM),                  # bias
        ],
        out_specs=pl.BlockSpec((pl.Squeezed(), 2, tn), lambda j, b: (b, 0, j)),
    )
    cost = pl.CostEstimate(
        flops=4 * B * N * n_h,                            # two matvecs per node
        transcendentals=0,
        bytes_accessed=(2 * B * N * n_h * itemsize        # h_pl + h_mi (dominant)
                        + B * n_h * itemsize              # u
                        + 2 * B * N * 4),                 # scores
    )
    scores = pl.pallas_call(
        _disc_scores_kernel,
        out_shape=jax.ShapeDtypeStruct((B, 2, N), jnp.float32),
        grid_spec=grid_spec,
        compiler_params=pltpu.CompilerParams(
            dimension_semantics=("parallel", "parallel"),
            vmem_limit_bytes=vmem_limit),
        cost_estimate=cost,
    )(u, h_pl, h_mi, bias1)

    if s_bias1 is None and s_bias2 is None:
        # (B, 2, N) is already the concat layout -> reshape is free, no extra pass.
        return scores.reshape(B, 2 * N)

    sc1 = scores[:, 0, :]
    sc2 = scores[:, 1, :]
    if s_bias1 is not None:
        sc1 = sc1 + s_bias1
    if s_bias2 is not None:
        sc2 = sc2 + s_bias2
    return jnp.concatenate((sc1, sc2), axis=1)


# ---------------------------------------------------------------------------
# GCN / AvgReadout / DGI wrappers (dense path; plain XLA around the kernel)
# ---------------------------------------------------------------------------
def gcn_forward(seq, adj, w_fc, gcn_bias, prelu_a):
    """GCN.forward (sparse=False): PReLU(adj @ (seq @ W.T) + bias)."""
    seq_fts = jnp.einsum('bni,oi->bno', seq, w_fc)          # nn.Linear, no bias
    out = jnp.einsum('bnm,bmo->bno', adj, seq_fts) + gcn_bias
    return jnp.where(out >= 0, out, prelu_a * out)          # PReLU (shared a)


def avg_readout(seq, msk=None):
    if msk is None:
        return jnp.mean(seq, axis=1)
    m = msk[..., None]
    return jnp.sum(seq * m, axis=1) / jnp.sum(m)


def dgi_forward(seq1, seq2, adj, params, msk=None,
                samp_bias1=None, samp_bias2=None):
    """DGI.forward (dense adjacency) with the discriminator as a Pallas kernel."""
    h_1 = gcn_forward(seq1, adj, params['w_fc'], params['gcn_bias'], params['prelu_a'])
    c = jax.nn.sigmoid(avg_readout(h_1, msk))
    h_2 = gcn_forward(seq2, adj, params['w_fc'], params['gcn_bias'], params['prelu_a'])
    return discriminator_forward(c, h_1, h_2,
                                 params['disc_w'], params['disc_b'],
                                 samp_bias1, samp_bias2)


# ---------------------------------------------------------------------------
# Pure-JAX references (torch semantics) and deterministic init
# ---------------------------------------------------------------------------
def _disc_reference(c, h_pl, h_mi, weight, bias):
    w2d = weight.reshape(weight.shape[1], weight.shape[2])
    sc1 = jnp.einsum('bni,ij,bj->bn', h_pl, w2d, c) + bias[0]
    sc2 = jnp.einsum('bni,ij,bj->bn', h_mi, w2d, c) + bias[0]
    return jnp.concatenate((sc1, sc2), axis=1)


def _dgi_reference(seq1, seq2, adj, params, msk=None):
    h_1 = gcn_forward(seq1, adj, params['w_fc'], params['gcn_bias'], params['prelu_a'])
    c = jax.nn.sigmoid(avg_readout(h_1, msk))
    h_2 = gcn_forward(seq2, adj, params['w_fc'], params['gcn_bias'], params['prelu_a'])
    return _disc_reference(c, h_1, h_2, params['disc_w'], params['disc_b'])


def _xavier_uniform(key, shape, fan_in, fan_out):
    bound = (6.0 / (fan_in + fan_out)) ** 0.5
    return jax.random.uniform(key, shape, jnp.float32, minval=-bound, maxval=bound)


def init_dgi_params(key, n_in, n_h):
    k_fc, k_bl = jax.random.split(key)
    # nn.Linear(n_in, n_h, bias=False): weight (n_h, n_in), xavier_uniform, GCN bias 0.
    w_fc = _xavier_uniform(k_fc, (n_h, n_in), n_in, n_h)
    gcn_bias = jnp.zeros((n_h,), jnp.float32)
    prelu_a = jnp.float32(0.25)                       # torch nn.PReLU() default
    # nn.Bilinear(n_h, n_h, 1): weight (1, n_h, n_h); torch xavier on this shape
    # uses fan_in = n_h*n_h, fan_out = n_h.  Bias filled with 0.
    disc_w = _xavier_uniform(k_bl, (1, n_h, n_h), n_h * n_h, n_h)
    disc_b = jnp.zeros((1,), jnp.float32)
    return dict(w_fc=w_fc, gcn_bias=gcn_bias, prelu_a=prelu_a,
                disc_w=disc_w, disc_b=disc_b)


if __name__ == "__main__":
    key = jax.random.PRNGKey(0)
    (k_par, k_s1, k_s2, k_adj, k_c, k_hp, k_hm, k_b1, k_b2) = jax.random.split(key, 9)

    B, N, n_in, n_h = 2, 8, 16, 32   # batch, nodes, input feats, hidden dim
    params = init_dgi_params(k_par, n_in, n_h)

    # ---- standalone discriminator check (the Pallas kernel) ----
    c = jax.random.normal(k_c, (B, n_h), jnp.float32)
    h_pl = jax.random.normal(k_hp, (B, N, n_h), jnp.float32)
    h_mi = jax.random.normal(k_hm, (B, N, n_h), jnp.float32)

    logits = jax.block_until_ready(
        discriminator_forward(c, h_pl, h_mi, params['disc_w'], params['disc_b']))
    ref = _disc_reference(c, h_pl, h_mi, params['disc_w'], params['disc_b'])
    assert logits.shape == (B, 2 * N)
    assert jnp.allclose(logits, ref, atol=1e-4, rtol=1e-4)

    # optional sample-bias path (s_bias1 / s_bias2)
    s1 = jax.random.normal(k_b1, (B, N), jnp.float32)
    s2 = jax.random.normal(k_b2, (B, N), jnp.float32)
    logits_b = jax.block_until_ready(
        discriminator_forward(c, h_pl, h_mi, params['disc_w'], params['disc_b'],
                              s1, s2))
    ref_b = jnp.concatenate((ref[:, :N] + s1, ref[:, N:] + s2), axis=1)
    assert jnp.allclose(logits_b, ref_b, atol=1e-4, rtol=1e-4)

    # ---- full DGI forward (GCN/readout/sigmoid in XLA + Pallas discriminator) ----
    seq1 = jax.random.normal(k_s1, (B, N, n_in), jnp.float32)
    seq2 = jax.random.normal(k_s2, (B, N, n_in), jnp.float32)
    adj = jax.random.uniform(k_adj, (B, N, N), jnp.float32)

    out = jax.block_until_ready(dgi_forward(seq1, seq2, adj, params))
    ref_dgi = _dgi_reference(seq1, seq2, adj, params)
    assert out.shape == (B, 2 * N)
    assert jnp.allclose(out, ref_dgi, atol=1e-4, rtol=1e-4)

    print("KERNEL_OK")
</pallas_src>

<mosaic_0001>
module attributes {stable_mosaic.version = 11 : i64} {
  func.func @_disc_scores_kernel(%arg0: i32, %arg1: i32, %arg2: memref<2x32xf32, #tpu.memory_space<vmem>>, %arg3: memref<1x8x32xf32, #tpu.memory_space<vmem>>, %arg4: memref<1x8x32xf32, #tpu.memory_space<vmem>>, %arg5: memref<1xf32, #tpu.memory_space<smem>>, %arg6: memref<1x2x8xf32, #tpu.memory_space<vmem>>) attributes {dimension_semantics = [#tpu.dimension_semantics<parallel>, #tpu.dimension_semantics<parallel>], iteration_bounds = array<i64: 1, 2>, scalar_prefetch = 0 : i64, scratch_operands = 0 : i64, tpu.core_type = #tpu.core_type<tc>, window_params = [{pipeline_mode = #tpu.pipeline_mode<synchronous>, transform_indices = @transform_0, window_bounds = array<i64: 2, 32>}, {transform_indices = @transform_1, window_bounds = array<i64: 1, 8, 32>}, {transform_indices = @transform_2, window_bounds = array<i64: 1, 8, 32>}, {transform_indices = @transform_3, window_bounds = array<i64: 1>}, {transform_indices = @transform_4, window_bounds = array<i64: 1, 2, 8>}]} {
    %0 = arith.index_cast %arg1 : i32 to index
    %c0 = arith.constant 0 : index
    %1 = vector.load %arg2[%0, %c0] : memref<2x32xf32, #tpu.memory_space<vmem>>, vector<1x32xf32>
    %c0_0 = arith.constant 0 : index
    %2 = memref.load %arg5[%c0_0] : memref<1xf32, #tpu.memory_space<smem>>
    %c0_1 = arith.constant 0 : index
    %c0_2 = arith.constant 0 : index
    %c0_3 = arith.constant 0 : index
    %3 = vector.load %arg3[%c0_1, %c0_2, %c0_3] : memref<1x8x32xf32, #tpu.memory_space<vmem>>, vector<1x8x32xf32>
    %4 = vector.shape_cast %3 : vector<1x8x32xf32> to vector<8x32xf32>
    %cst = arith.constant dense<0.000000e+00> : vector<1x8xf32>
    %5 = tpu.matmul %1, %4, %cst {dimension_numbers = #tpu.dot_dimension_numbers<[1], [1], [0], [0], [0, 0, 1, 0], [], []>} : vector<1x32xf32>, vector<8x32xf32>, vector<1x8xf32> -> vector<1x8xf32>
    %c0_4 = arith.constant 0 : index
    %c0_5 = arith.constant 0 : index
    %c0_6 = arith.constant 0 : index
    %6 = vector.load %arg4[%c0_4, %c0_5, %c0_6] : memref<1x8x32xf32, #tpu.memory_space<vmem>>, vector<1x8x32xf32>
    %7 = vector.shape_cast %6 : vector<1x8x32xf32> to vector<8x32xf32>
    %cst_7 = arith.constant dense<0.000000e+00> : vector<1x8xf32>
    %8 = tpu.matmul %1, %7, %cst_7 {dimension_numbers = #tpu.dot_dimension_numbers<[1], [1], [0], [0], [0, 0, 1, 0], [], []>} : vector<1x32xf32>, vector<8x32xf32>, vector<1x8xf32> -> vector<1x8xf32>
    %9 = vector.broadcast %2 : f32 to vector<1x8xf32>
    %10 = arith.addf %5, %9 : vector<1x8xf32>
    %c0_8 = arith.constant 0 : index
    %c0_9 = arith.constant 0 : index
    %c0_10 = arith.constant 0 : index
    %11 = vector.load %arg6[%c0_8, %c0_9, %c0_10] : memref<1x2x8xf32, #tpu.memory_space<vmem>>, vector<1x1x8xf32>
    %12 = vector.shape_cast %11 : vector<1x1x8xf32> to vector<1x8xf32>
    %13 = vector.shape_cast %10 : vector<1x8xf32> to vector<1x1x8xf32>
    tpu.vector_store %arg6[%c0_8, %c0_9, %c0_10], %13 {strides = array<i32>} : memref<1x2x8xf32, #tpu.memory_space<vmem>>, vector<1x1x8xf32>,
    %14 = vector.broadcast %2 : f32 to vector<1x8xf32>
    %15 = arith.addf %8, %14 : vector<1x8xf32>
    %c0_11 = arith.constant 0 : index
    %c1 = arith.constant 1 : index
    %c0_12 = arith.constant 0 : index
    %16 = vector.load %arg6[%c0_11, %c1, %c0_12] : memref<1x2x8xf32, #tpu.memory_space<vmem>>, vector<1x1x8xf32>
    %17 = vector.shape_cast %16 : vector<1x1x8xf32> to vector<1x8xf32>
    %18 = vector.shape_cast %15 : vector<1x8xf32> to vector<1x1x8xf32>
    tpu.vector_store %arg6[%c0_11, %c1, %c0_12], %18 {strides = array<i32>} : memref<1x2x8xf32, #tpu.memory_space<vmem>>, vector<1x1x8xf32>,
    return
  }
  func.func @transform_0(%arg0: i32, %arg1: i32) -> (i32, i32) {
    %c0_i32 = arith.constant 0 : i32
    %c0_i32_0 = arith.constant 0 : i32
    %c0_i32_1 = arith.constant 0 : i32
    return %c0_i32, %c0_i32_0 : i32, i32
  }
  func.func @transform_1(%arg0: i32, %arg1: i32) -> (i32, i32, i32) {
    %c0_i32 = arith.constant 0 : i32
    %c0_i32_0 = arith.constant 0 : i32
    return %arg1, %arg0, %c0_i32 : i32, i32, i32
  }
  func.func @transform_2(%arg0: i32, %arg1: i32) -> (i32, i32, i32) {
    %c0_i32 = arith.constant 0 : i32
    %c0_i32_0 = arith.constant 0 : i32
    return %arg1, %arg0, %c0_i32 : i32, i32, i32
  }
  func.func @transform_3(%arg0: i32, %arg1: i32) -> i32 {
    %c0_i32 = arith.constant 0 : i32
    %c0_i32_0 = arith.constant 0 : i32
    return %c0_i32 : i32
  }
  func.func @transform_4(%arg0: i32, %arg1: i32) -> (i32, i32, i32) {
    %c0_i32 = arith.constant 0 : i32
    %c0_i32_0 = arith.constant 0 : i32
    return %arg1, %c0_i32, %arg0 : i32, i32, i32
  }
}

</mosaic_0001>

<llo_original>
// kernel: tpu_custom_call.1
$region0: #{tpu_custom_call.1}
  #allocation0 [shape = 'u32[]', space=smem, size = 0x4, offset = 0x4, fixed_abs, tag = 'smem constant byte address 0x4 - core index']
  #allocation1 [shape = 'u32[72,128]{1,0:T(1,128)}', space=vmem, size = 0x9000, scoped, tag = 'internal scratch']
  #allocation2 [shape = 'f32[1]{0:T(128)S(6)}', space=smem, size = 0x200, scoped, tag = 'scoped memory for tpu_custom_call.1']
  %s0 = inlined_call_operand.vmem [shape: f32[2,32], index: 0, kind: input, shape index: {}]
  %s1 = inlined_call_operand.hbm [shape: f32[2,8,32], index: 1, kind: input, shape index: {}]
  %s2 = inlined_call_operand.hbm [shape: f32[2,8,32], index: 2, kind: input, shape index: {}]
  %s3 = inlined_call_operand.<no memory space> [shape: f32[1], index: 3, kind: input, shape index: {}]
  %s4 = inlined_call_operand.hbm [shape: f32[2,2,8], index: 4, kind: output, shape index: {}]
  %s5 = sld [smem:[#allocation0]]
  $region57: #{tpu_custom_call.1} parent=0
    _
  %s7 = ssub.s32 1, %s5
  %s8 = scalar_select 0, %s7, %s5
  %9 = sst [smem:[#allocation2]] %s3
  $region1: #{tpu_custom_call.1} parent=0
    #allocation3 [shape = 'u8[8192]{0}', space=vmem, size = 0x2000, scoped, tag = 'input window, operand 1']
    #allocation4 [shape = 's32[2]{0}', space=sflag, size = 0x8, scoped, tag = 'scoped memory for tpu_custom_call.1']
    #allocation5 [shape = 's32[2]{0}', space=sflag, size = 0x8, scoped, tag = 'scoped memory for tpu_custom_call.1']
    #allocation6 [shape = 'u8[8192]{0}', space=vmem, size = 0x2000, scoped, tag = 'input window, operand 2']
    #allocation7 [shape = 's32[2]{0}', space=sflag, size = 0x8, scoped, tag = 'scoped memory for tpu_custom_call.1']
    #allocation8 [shape = 'u8[2048]{0}', space=vmem, size = 0x800, scoped, tag = 'output window, operand 0']
    %10 = vsyncpa [#allocation4], 0
    %s11 = scalar_lea.sflag [#allocation4], 1
    %12 = vsyncpa %s11, 0
    %13 = vsyncpa [#allocation7], 0
    %s14 = scalar_lea.sflag [#allocation7], 1
    %15 = vsyncpa %s14, 0
    %16 = vsyncpa [#allocation5], 0
    %s17 = scalar_lea.sflag [#allocation5], 1
    %18 = vsyncpa %s17, 0
    loop: start=0, step=1, limit=4
    $region2: #{tpu_custom_call.1} parent=1 // loop_pre_header
      _
    $region3: #{tpu_custom_call.1} parent=1 // loop_header
      %s20 = sphi 0, %s24
      %p21 = scmp.ge.s32.totalorder %s20, 4
      %s27 = sphi 0, %s39
      %s28 = sphi 0, %s35
      %s29 = sphi 0, %s27
      %s30 = sphi 0, %s28
      %s31 = sphi 0, %s29
      %s32 = sphi 0, %s30
      %s40 = sphi 0, %s40
      %s42 = sphi 0, %s40
      %s43 = sphi 0, %s42
      %s57 = sphi 0, %s43
      %s65 = sphi 0, %s67
      %s68 = sphi 0, %s65
      %s69 = sphi 0, %s68
      %s85 = sphi 0, %s69
      %s93 = sphi 0, %s95
      %s96 = sphi 0, %s93
      %s97 = sphi 0, %s96
      %s113 = sphi 0, %s97
      %s117 = sphi 0, %s117
      %s119 = sphi 0, %s117
      %s120 = sphi 0, %s119
      %s134 = sphi 0, %s120
      %s142 = sphi 0, %s144
      %s145 = sphi 0, %s142
      %s146 = sphi 0, %s145
      %s162 = sphi 0, %s146
    $region4: #{tpu_custom_call.1} parent=1 // loop_header_branch
      %23 = sbr.rel (%p21) target = $region8
    $region5: #{tpu_custom_call.1} parent=1 // loop_body
      %s25 = ssub.s32 %s20, 1
      %s26 = ssub.s32 %s20, 2
      %s33 = sadd.s32 1, %s28
      %p34 = scmp.ge.s32.totalorder %s33, 2
      %s35 = scalar_select %p34, 0, %s33
      %s36 = sadd.s32 1, %s27
      %s37 = scalar_select %p34, %s36, %s27
      %p38 = scmp.ge.s32.totalorder %s37, 1
      %s39 = scalar_select %p38, 0, %s37
      %s41 = sadd.s32 %s40, 1
      %p44 = scmp.eq.s32.totalorder %s20, 1
      %p45 = scmp.ne.s32.totalorder %s40, %s42
      %p46 = scmp.eq.s32.totalorder %s20, 0
      %p47 = por %p45, %p46
      %p48 = scmp.ne.s32.totalorder %s40, %s42
      %p49 = scmp.eq.s32.totalorder %s25, 1
      %p50 = por %p48, %p49
      %p51 = scmp.ne.s32.totalorder %s42, %s43
      %p52 = scmp.eq.s32.totalorder %s25, 0
      %p53 = por %p51, %p52
      %p54 = scmp.ne.s32.totalorder %s42, %s43
      %p55 = scmp.eq.s32.totalorder %s26, 1
      %p56 = por %p54, %p55
      %p58 = scmp.ne.s32.totalorder %s43, %s57
      %p59 = scmp.eq.s32.totalorder %s26, 0
      %p60 = por %p58, %p59
      %s61 = ssub.s32 %s28, %s35
      %s62 = ssub.s32 %s27, %s39
      %s63 = sor.u32 %s61, %s62
      %p64 = scmp.eq.s32.totalorder %s63, 0
      %s66 = sadd.s32 %s65, 1
      %s67 = scalar_select %p64, %s65, %s66
      %p70 = pneg %p64
      %p71 = scmp.eq.s32.totalorder %s20, 1
      %p72 = por %p70, %p71
      %p73 = scmp.ne.s32.totalorder %s65, %s68
      %p74 = scmp.eq.s32.totalorder %s20, 0
      %p75 = por %p73, %p74
      %p76 = scmp.ne.s32.totalorder %s65, %s68
      %p77 = scmp.eq.s32.totalorder %s25, 1
      %p78 = por %p76, %p77
      %p79 = scmp.ne.s32.totalorder %s68, %s69
      %p80 = scmp.eq.s32.totalorder %s25, 0
      %p81 = por %p79, %p80
      %p82 = scmp.ne.s32.totalorder %s68, %s69
      %p83 = scmp.eq.s32.totalorder %s26, 1
      %p84 = por %p82, %p83
      %p86 = scmp.ne.s32.totalorder %s69, %s85
      %p87 = scmp.eq.s32.totalorder %s26, 0
      %p88 = por %p86, %p87
      %s89 = ssub.s32 %s28, %s35
      %s90 = ssub.s32 %s27, %s39
      %s91 = sor.u32 %s89, %s90
      %p92 = scmp.eq.s32.totalorder %s91, 0
      %s94 = sadd.s32 %s93, 1
      %s95 = scalar_select %p92, %s93, %s94
      %p98 = pneg %p92
      %p99 = scmp.eq.s32.totalorder %s20, 1
      %p100 = por %p98, %p99
      %p101 = scmp.ne.s32.totalorder %s93, %s96
      %p102 = scmp.eq.s32.totalorder %s20, 0
      %p103 = por %p101, %p102
      %p104 = scmp.ne.s32.totalorder %s93, %s96
      %p105 = scmp.eq.s32.totalorder %s25, 1
      %p106 = por %p104, %p105
      %p107 = scmp.ne.s32.totalorder %s96, %s97
      %p108 = scmp.eq.s32.totalorder %s25, 0
      %p109 = por %p107, %p108
      %p110 = scmp.ne.s32.totalorder %s96, %s97
      %p111 = scmp.eq.s32.totalorder %s26, 1
      %p112 = por %p110, %p111
      %p114 = scmp.ne.s32.totalorder %s97, %s113
      %p115 = scmp.eq.s32.totalorder %s26, 0
      %p116 = por %p114, %p115
      %s118 = sadd.s32 %s117, 1
      %p121 = scmp.eq.s32.totalorder %s20, 1
      %p122 = scmp.ne.s32.totalorder %s117, %s119
      %p123 = scmp.eq.s32.totalorder %s20, 0
      %p124 = por %p122, %p123
      %p125 = scmp.ne.s32.totalorder %s117, %s119
      %p126 = scmp.eq.s32.totalorder %s25, 1
      %p127 = por %p125, %p126
      %p128 = scmp.ne.s32.totalorder %s119, %s120
      %p129 = scmp.eq.s32.totalorder %s25, 0
      %p130 = por %p128, %p129
      %p131 = scmp.ne.s32.totalorder %s119, %s120
      %p132 = scmp.eq.s32.totalorder %s26, 1
      %p133 = por %p131, %p132
      %p135 = scmp.ne.s32.totalorder %s120, %s134
      %p136 = scmp.eq.s32.totalorder %s26, 0
      %p137 = por %p135, %p136
      %s138 = ssub.s32 %s28, %s35
      %s139 = ssub.s32 %s27, %s39
      %s140 = sor.u32 %s138, %s139
      %p141 = scmp.eq.s32.totalorder %s140, 0
      %s143 = sadd.s32 %s142, 1
      %s144 = scalar_select %p141, %s142, %s143
      %p147 = pneg %p141
      %p148 = scmp.eq.s32.totalorder %s20, 1
      %p149 = por %p147, %p148
      %p150 = scmp.ne.s32.totalorder %s142, %s145
      %p151 = scmp.eq.s32.totalorder %s20, 0
      %p152 = por %p150, %p151
      %p153 = scmp.ne.s32.totalorder %s142, %s145
      %p154 = scmp.eq.s32.totalorder %s25, 1
      %p155 = por %p153, %p154
      %p156 = scmp.ne.s32.totalorder %s145, %s146
      %p157 = scmp.eq.s32.totalorder %s25, 0
      %p158 = por %p156, %p157
      %p159 = scmp.ne.s32.totalorder %s145, %s146
      %p160 = scmp.eq.s32.totalorder %s26, 1
      %p161 = por %p159, %p160
      %p163 = scmp.ne.s32.totalorder %s146, %s162
      %p164 = scmp.eq.s32.totalorder %s26, 0
      %p165 = por %p163, %p164
      %p166 = scmp.le.s32.totalorder 1, %s20
      %p167 = scmp.lt.s32.totalorder %s20, 3
      %p168 = pnand %p166, %p167
      %p169 = pneg %p168
      // Predicated region
      $region9: #{tpu_custom_call.1} parent=5 // pred_check
        _
      $region10: #{tpu_custom_call.1} parent=5 // pred_check_branch
        %171 = sbr.rel (%p168) target = $region12
      $region11: #{tpu_custom_call.1} parent=5 // pred_region
        %s172 = ssub.s32 %s20, 1
        // Predicated region
        $region13: #{tpu_custom_call.1} parent=11 // pred_check
          %p173 = pneg %p53
        $region14: #{tpu_custom_call.1} parent=11 // pred_check_branch
          %175 = sbr.rel (%p173) target = $region16
        $region15: #{tpu_custom_call.1} parent=11 // pred_region
          _
        $region16: #{tpu_custom_call.1} parent=11 // pred_fallthru
          _
        // Predicated region
        $region17: #{tpu_custom_call.1} parent=11 // pred_check
          %p176 = pneg %p130
        $region18: #{tpu_custom_call.1} parent=11 // pred_check_branch
          %178 = sbr.rel (%p176) target = $region20
        $region19: #{tpu_custom_call.1} parent=11 // pred_region
          _
        $region20: #{tpu_custom_call.1} parent=11 // pred_fallthru
          _
      $region12: #{tpu_custom_call.1} parent=5 // pred_fallthru
        _
      %p179 = scmp.lt.s32.totalorder %s20, 2
      // Predicated region
      $region21: #{tpu_custom_call.1} parent=5 // pred_check
        %p180 = pneg %p179
      $region22: #{tpu_custom_call.1} parent=5 // pred_check_branch
        %182 = sbr.rel (%p180) target = $region24
      $region23: #{tpu_custom_call.1} parent=5 // pred_region
        // Predicated region
        $region25: #{tpu_custom_call.1} parent=23 // pred_check
          %p183 = pneg %p75
        $region26: #{tpu_custom_call.1} parent=23 // pred_check_branch
          %185 = sbr.rel (%p183) target = $region28
        $region27: #{tpu_custom_call.1} parent=23 // pred_region
          %s186 = sand.u32 %s65, 1
          %s187 = scalar_lea.sflag [#allocation4], %s186
          %s188 = sand.u32 %s65, 1
          %s189 = smul.addr %s188, 8
          %s190 = scalar_lea.vmem [#allocation3], %s189
          %192 = vsyncadd %s187, 0
          %s193 = sadd.s32 %s27, %s28
          %s194 = smul.addr %s193, 8
          %s195 = scalar_lea.hbm %s1, %s194
          %s197 = sshll.u32 %s195, 4
          %s198 = int_to_ptr.hbm [resolvable:$true] %s197
          %s199 = sshll.u32 %s190, 4
          %s200 = int_to_ptr.vmem [resolvable:$true] %s199
          %202 = dma.hbm_to_vmem [thread:$0]  %s198, 128, %s200, %s187
        $region28: #{tpu_custom_call.1} parent=23 // pred_fallthru
          _
        // Predicated region
        $region29: #{tpu_custom_call.1} parent=23 // pred_check
          %p203 = pneg %p103
        $region30: #{tpu_custom_call.1} parent=23 // pred_check_branch
          %205 = sbr.rel (%p203) target = $region32
        $region31: #{tpu_custom_call.1} parent=23 // pred_region
          %s206 = sand.u32 %s93, 1
          %s207 = scalar_lea.sflag [#allocation7], %s206
          %s208 = sand.u32 %s93, 1
          %s209 = smul.addr %s208, 8
          %s210 = scalar_lea.vmem [#allocation6], %s209
          %212 = vsyncadd %s207, 0
          %s213 = sadd.s32 %s27, %s28
          %s214 = smul.addr %s213, 8
          %s215 = scalar_lea.hbm %s2, %s214
          %s217 = sshll.u32 %s215, 4
          %s218 = int_to_ptr.hbm [resolvable:$true] %s217
          %s219 = sshll.u32 %s210, 4
          %s220 = int_to_ptr.vmem [resolvable:$true] %s219
          %222 = dma.hbm_to_vmem [thread:$0]  %s218, 128, %s220, %s207
        $region32: #{tpu_custom_call.1} parent=23 // pred_fallthru
          _
      $region24: #{tpu_custom_call.1} parent=5 // pred_fallthru
        _
      %p223 = scmp.le.s32.totalorder 1, %s20
      %p224 = scmp.lt.s32.totalorder %s20, 3
      %p225 = pnand %p223, %p224
      %p226 = pneg %p225
      // Predicated region
      $region33: #{tpu_custom_call.1} parent=5 // pred_check
        _
      $region34: #{tpu_custom_call.1} parent=5 // pred_check_branch
        %228 = sbr.rel (%p225) target = $region36
      $region35: #{tpu_custom_call.1} parent=5 // pred_region
        %s229 = ssub.s32 %s20, 1
        %s230 = sand.u32 %s68, 1
        %s231 = scalar_lea.sflag [#allocation4], %s230
        %s232 = sand.u32 %s68, 1
        %s233 = smul.addr %s232, 8
        %s234 = scalar_lea.vmem [#allocation3], %s233
        // Predicated region
        $region37: #{tpu_custom_call.1} parent=35 // pred_check
          %p235 = pneg %p81
        $region38: #{tpu_custom_call.1} parent=35 // pred_check_branch
          %237 = sbr.rel (%p235) target = $region40
        $region39: #{tpu_custom_call.1} parent=35 // pred_region
          %239 = dma.done %s231, 128
        $region40: #{tpu_custom_call.1} parent=35 // pred_fallthru
          _
        %s240 = sand.u32 %s96, 1
        %s241 = scalar_lea.sflag [#allocation7], %s240
        %s242 = sand.u32 %s96, 1
        %s243 = smul.addr %s242, 8
        %s244 = scalar_lea.vmem [#allocation6], %s243
        // Predicated region
        $region41: #{tpu_custom_call.1} parent=35 // pred_check
          %p245 = pneg %p109
        $region42: #{tpu_custom_call.1} parent=35 // pred_check_branch
          %247 = sbr.rel (%p245) target = $region44
        $region43: #{tpu_custom_call.1} parent=35 // pred_region
          %249 = dma.done %s241, 128
        $region44: #{tpu_custom_call.1} parent=35 // pred_fallthru
          _
        %p250 = pneg %p53
        %p251 = pneg %p50
        %s252 = sand.u32 %s68, 1
        %s253 = scalar_lea.sflag [#allocation4], %s252
        %s254 = sand.u32 %s68, 1
        %s255 = smul.addr %s254, 8
        %s256 = scalar_lea.vmem [#allocation3], %s255
        %p257 = pneg %p81
        %p258 = pneg %p78
        %s259 = sand.u32 %s96, 1
        %s260 = scalar_lea.sflag [#allocation7], %s259
        %s261 = sand.u32 %s96, 1
        %s262 = smul.addr %s261, 8
        %s263 = scalar_lea.vmem [#allocation6], %s262
        %p264 = pneg %p109
        %p265 = pneg %p106
        %p266 = pneg %p130
        %p267 = pneg %p127
        %p268 = pneg %p158
        %p269 = pneg %p155
        %s270 = sand.u32 %s145, 1
        %s271 = scalar_lea.sflag [#allocation5], %s270
        %s272 = sand.u32 %s145, 1
        %s273 = smul.addr %s272, 2
        %s274 = scalar_lea.vmem [#allocation8], %s273
        %s275 = scalar_lea.vmem %s0, %s30
        %v276 = vld [vmem:[%s275] sm:$0x1]
        %s277 = sld [smem:[#allocation2]]
        %v278 = vld [vmem:[%s234] sm:$0xff]
        %v279 = vld [vmem:[%s244] sm:$0xff]
        %v280 = vstv %s277
        %vm281 = vcmask 261120
        %v283 = vsel %vm281, %v276, 0
        %v286 = vsel %vm281, %v278, 0
        %288 = vmatpush.xpose.msra.mxu0 0.0
        %289 = vmatpush.xpose.msra.mxu0 0.0
        %290 = vmatpush.xpose.msra.mxu0 0.0
        %291 = vmatpush.xpose.msra.mxu0 0.0
        %292 = vmatpush.xpose.msra.mxu0 0.0
        %293 = vmatpush.xpose.msra.mxu0 0.0
        %294 = vmatpush.xpose.msra.mxu0 0.0
        %295 = vmatpush.xpose.msra.mxu0 0.0
        %296 = vmatpush.xpose.msra.mxu0 0.0
        %297 = vmatpush.xpose.msra.mxu0 0.0
        %298 = vmatpush.xpose.msra.mxu0 0.0
        %299 = vmatpush.xpose.msra.mxu0 0.0
        %300 = vmatpush.xpose.msra.mxu0 0.0
        %301 = vmatpush.xpose.msra.mxu0 0.0
        %302 = vmatpush.xpose.msra.mxu0 0.0
        %303 = vmatpush.xpose.msra.mxu0 %v286
        %304 = vmatmul.f32.gmra.mxu0 %v283
        %v305 = vpop.f32.mrf.mxu0
        %v306 = vadd.f32 %v280, %v305
        %307 = vdwg.mxu0
        %vm308 = vcmask 57344
        %309 = vst.msk [vmem:[%s274] sm:$0x1] %vm308, %v306
        %v311 = vsel %vm281, %v279, 0
        %313 = vmatpush.xpose.msra.mxu0 0.0
        %314 = vmatpush.xpose.msra.mxu0 0.0
        %315 = vmatpush.xpose.msra.mxu0 0.0
        %316 = vmatpush.xpose.msra.mxu0 0.0
        %317 = vmatpush.xpose.msra.mxu0 0.0
        %318 = vmatpush.xpose.msra.mxu0 0.0
        %319 = vmatpush.xpose.msra.mxu0 0.0
        %320 = vmatpush.xpose.msra.mxu0 0.0
        %321 = vmatpush.xpose.msra.mxu0 0.0
        %322 = vmatpush.xpose.msra.mxu0 0.0
        %323 = vmatpush.xpose.msra.mxu0 0.0
        %324 = vmatpush.xpose.msra.mxu0 0.0
        %325 = vmatpush.xpose.msra.mxu0 0.0
        %326 = vmatpush.xpose.msra.mxu0 0.0
        %327 = vmatpush.xpose.msra.mxu0 0.0
        %328 = vmatpush.xpose.msra.mxu0 %v311
        %329 = vmatmul.f32.gmra.mxu0 %v283
        %v330 = vpop.f32.mrf.mxu0
        %v331 = vadd.f32 %v280, %v330
        %332 = vdwg.mxu0
        %333 = vst.msk [vmem:[%s274 + $0x1] sm:$0x1] %vm308, %v331
        %s334 = sand.u32 %s145, 1
        %s335 = scalar_lea.sflag [#allocation5], %s334
        %s336 = sand.u32 %s145, 1
        %s337 = smul.addr %s336, 2
        %s338 = scalar_lea.vmem [#allocation8], %s337
        // Predicated region
        $region45: #{tpu_custom_call.1} parent=35 // pred_check
          %p339 = pneg %p155
        $region46: #{tpu_custom_call.1} parent=35 // pred_check_branch
          %341 = sbr.rel (%p339) target = $region48
        $region47: #{tpu_custom_call.1} parent=35 // pred_region
          %343 = vsyncadd %s335, 0
          %s344 = sadd.s32 %s29, %s30
          %s345 = smul.addr %s344, 2
          %s346 = scalar_lea.hbm %s4, %s345
          %s348 = sshll.u32 %s338, 4
          %s349 = int_to_ptr.vmem [resolvable:$true] %s348
          %s350 = sshll.u32 %s346, 4
          %s351 = int_to_ptr.hbm [resolvable:$true] %s350
          %353 = dma.vmem_to_hbm [thread:$0]  %s349, 32, %s351, %s335
        $region48: #{tpu_custom_call.1} parent=35 // pred_fallthru
          _
      $region36: #{tpu_custom_call.1} parent=5 // pred_fallthru
        _
      %p354 = scmp.le.s32.totalorder 2, %s20
      // Predicated region
      $region49: #{tpu_custom_call.1} parent=5 // pred_check
        %p355 = pneg %p354
      $region50: #{tpu_custom_call.1} parent=5 // pred_check_branch
        %357 = sbr.rel (%p355) target = $region52
      $region51: #{tpu_custom_call.1} parent=5 // pred_region
        %s358 = ssub.s32 %s20, 2
        // Predicated region
        $region53: #{tpu_custom_call.1} parent=51 // pred_check
          %p359 = pneg %p161
        $region54: #{tpu_custom_call.1} parent=51 // pred_check_branch
          %361 = sbr.rel (%p359) target = $region56
        $region55: #{tpu_custom_call.1} parent=51 // pred_region
          %s362 = sand.u32 %s146, 1
          %s363 = scalar_lea.sflag [#allocation5], %s362
          %s364 = sand.u32 %s146, 1
          %s365 = smul.addr %s364, 2
          %s366 = scalar_lea.vmem [#allocation8], %s365
          %368 = dma.done %s363, 32
        $region56: #{tpu_custom_call.1} parent=51 // pred_fallthru
          _
      $region52: #{tpu_custom_call.1} parent=5 // pred_fallthru
        _
    $region6: #{tpu_custom_call.1} parent=1 // loop_footer
      %s24 = sadd.s32 1, %s20
    $region7: #{tpu_custom_call.1} parent=1 // loop_footer_branch
      %19 = sbr.rel target = $region3
    $region8: #{tpu_custom_call.1} parent=1 // loop_exit
      _
    %369 = vsyncpa [#allocation4], 1
    %s370 = scalar_lea.sflag [#allocation4], 1
    %371 = vsyncpa %s370, 1
    %372 = vsyncpa [#allocation7], 1
    %s373 = scalar_lea.sflag [#allocation7], 1
    %374 = vsyncpa %s373, 1
    %375 = vsyncpa [#allocation5], 1
    %s376 = scalar_lea.sflag [#allocation5], 1
    %377 = vsyncpa %s376, 1

</llo_original>
